<compile_context>
chip_gen: v5e
topology: v5e:2x2
jax: 0.10.0
libtpu: 0.0.40
codegen_flags: <defaults>
</compile_context>

<pallas_src>
import functools

import jax
import jax.numpy as jnp
from jax import lax
from jax.experimental import pallas as pl
from jax.experimental.pallas import tpu as pltpu


def _round_up(x, m):
    return ((x + m - 1) // m) * m


def fuzzy_embedding_kernel(x_ref, w_ref, b_ref, cnt_ref, cen_ref,
                           *out_refs,
                           temperature, num_clusters, batch_size, tile_b,
                           emit_soft_assign, subtract_max):
    f32 = jnp.float32
    eps2 = 1e-24  # (1e-12)**2 -> matches torch F.normalize(eps=1e-12)

    if emit_soft_assign:
        fuzzy_ref, assign_ref, ent_ref = out_refs
    else:
        fuzzy_ref, ent_ref = out_refs
        assign_ref = None

    x = x_ref[...]        # (TB, D_in)  native dtype (bf16-friendly)
    w = w_ref[...]        # (D_in, E)
    b = b_ref[...]        # (1, E)      f32 (prepared)
    cnt = cnt_ref[...]    # (E, Kp)     pre-normalized centers^T, padded cols zero
    cen = cen_ref[...]    # (Kp, E)     raw centers, padded rows zero

    # Linear projection on the MXU, f32 accumulate, + bias (already f32).
    x_embed = jnp.dot(x, w, preferred_element_type=f32) + b

    # L2 normalize via rsqrt (EUP slot; no sqrt+divide chain on the VALU).
    x_ss = jnp.sum(x_embed * x_embed, axis=-1, keepdims=True)
    x_embed = x_embed * lax.rsqrt(jnp.maximum(x_ss, eps2))

    # Cosine similarity: centers are pre-normalized + pre-transposed in
    # prepare_params(), so this is a plain (M,K)x(K,N) MXU matmul.
    sim = jnp.dot(x_embed, cnt, preferred_element_type=f32)     # (TB, Kp)

    # Temperature-scaled softmax over the (lane-padded) cluster axis.
    col = lax.broadcasted_iota(jnp.int32, sim.shape, 1)
    valid_col = col < num_clusters
    logits = jnp.where(valid_col, sim * (1.0 / temperature), -1e30)
    if subtract_max:
        # Only needed when 1/temperature is large enough that exp() could
        # overflow f32; |sim| <= 1, so for temperature=0.1 this is skipped.
        logits = logits - jnp.max(logits, axis=-1, keepdims=True)
    exp_l = jnp.exp(logits)
    row_sum = jnp.sum(exp_l, axis=-1, keepdims=True)
    # EUP reciprocal instead of a VALU divide (approx=False keeps 1e-5 match).
    soft_assign = exp_l * pl.reciprocal(row_sum, approx=False)  # padded cols ~ 0

    # Fuzzy embedding: padded center rows are zero, so padded columns are inert.
    fuzzy = jnp.dot(soft_assign, cen, preferred_element_type=f32)
    f_ss = jnp.sum(fuzzy * fuzzy, axis=-1, keepdims=True)
    fuzzy = fuzzy * lax.rsqrt(jnp.maximum(f_ss, eps2))

    # Entropy from already-available softmax internals:
    #   log p = logits - log(row_sum)   (exact; reference adds 1e-8 inside log,
    #   difference is far below the 1e-5 tolerance)
    log_p = logits - jnp.log(row_sum)
    plogp = jnp.where(valid_col, soft_assign * log_p, 0.0)
    ent_rows = -jnp.sum(plogp, axis=-1, keepdims=True)          # (TB, 1)

    # Drop contributions from padded batch rows of this tile.
    row = lax.broadcasted_iota(jnp.int32, ent_rows.shape, 0)
    global_row = row + pl.program_id(0) * tile_b
    ent_rows = jnp.where(global_row < batch_size, ent_rows, 0.0)

    fuzzy_ref[...] = fuzzy.astype(fuzzy_ref.dtype)
    if emit_soft_assign:
        assign_ref[...] = soft_assign.astype(assign_ref.dtype)
    ent_ref[0, 0] = jnp.sum(ent_rows)                           # scalar -> SMEM


def prepare_params(proj_w, proj_b, cluster_centers, param_dtype=jnp.float32):
    """One-time parameter prep (hoisted out of the per-call path):
      * transpose the torch-style Linear weight to (input_dim, embed_dim),
      * bias reshaped to (1, embed_dim) in f32 (added after the f32-accum MXU),
      * cluster axis zero-padded to a lane-dense multiple of 128,
      * centers pre-normalized and pre-transposed to (embed_dim, K_pad) so the
        similarity matmul is a canonical MXU feed with no in-kernel rework.
    Pass param_dtype=jnp.bfloat16 for max MXU throughput / half the DMA bytes
    (loosens agreement with the f32 reference)."""
    embed_dim, input_dim = proj_w.shape
    num_clusters, embed_dim_c = cluster_centers.shape
    assert embed_dim_c == embed_dim
    k_pad = _round_up(num_clusters, 128)

    w_t = jnp.transpose(proj_w).astype(param_dtype)            # (D_in, E)
    b2 = jnp.reshape(proj_b, (1, embed_dim)).astype(jnp.float32)

    c_f32 = cluster_centers.astype(jnp.float32)
    c_ss = jnp.sum(c_f32 * c_f32, axis=-1, keepdims=True)
    c_norm = c_f32 * lax.rsqrt(jnp.maximum(c_ss, 1e-24))

    centers_pad = jnp.zeros((k_pad, embed_dim), jnp.float32)
    centers_pad = centers_pad.at[:num_clusters].set(c_f32).astype(param_dtype)

    c_norm_t = jnp.zeros((embed_dim, k_pad), jnp.float32)
    c_norm_t = c_norm_t.at[:, :num_clusters].set(jnp.transpose(c_norm))
    c_norm_t = c_norm_t.astype(param_dtype)

    return w_t, b2, c_norm_t, centers_pad, num_clusters


def fuzzy_embedding_forward(x, w_t, b2, c_norm_t, centers_pad, num_clusters,
                            temperature=0.1, tile_b=None,
                            out_dtype=jnp.float32, emit_soft_assign=True,
                            dimension_semantics=("parallel",)):
    """x: (B, input_dim).  Params come from prepare_params().
    For v7x, pass dimension_semantics=(pltpu.CORE_PARALLEL,) to split the
    batch grid across both TensorCores."""
    B, input_dim = x.shape
    k_pad, embed_dim = centers_pad.shape

    if tile_b is None:
        # Large tiles amortize per-grid-step overhead and keep DMA bursts
        # full; ~7-8 MiB double-buffered at 2048, inside the 32 MiB scoped
        # VMEM budget set below on every generation (v5e / v6e / v7x).
        tile_b = min(2048, _round_up(B, 8))
    b_pad = _round_up(B, tile_b)
    if b_pad != B:
        x = jnp.pad(x, ((0, b_pad - B), (0, 0)))
    num_tiles = b_pad // tile_b

    # Cosine similarities are in [-1, 1]; skip the softmax max-subtraction
    # whenever exp(1/temperature) cannot overflow f32.
    subtract_max = (1.0 / float(temperature)) > 80.0

    kernel = functools.partial(
        fuzzy_embedding_kernel,
        temperature=float(temperature),
        num_clusters=num_clusters,
        batch_size=B,
        tile_b=tile_b,
        emit_soft_assign=emit_soft_assign,
        subtract_max=subtract_max)

    out_specs = [pl.BlockSpec((tile_b, embed_dim), lambda i: (i, 0))]
    out_shape = [jax.ShapeDtypeStruct((b_pad, embed_dim), out_dtype)]
    if emit_soft_assign:
        out_specs.append(pl.BlockSpec((tile_b, k_pad), lambda i: (i, 0)))
        out_shape.append(jax.ShapeDtypeStruct((b_pad, k_pad), out_dtype))
    out_specs.append(pl.BlockSpec((1, 1), lambda i: (i, 0),
                                  memory_space=pltpu.MemorySpace.SMEM))
    out_shape.append(jax.ShapeDtypeStruct((num_tiles, 1), jnp.float32))

    outs = pl.pallas_call(
        kernel,
        grid=(num_tiles,),
        in_specs=[
            pl.BlockSpec((tile_b, input_dim), lambda i: (i, 0)),
            pl.BlockSpec((input_dim, embed_dim), lambda i: (0, 0)),
            pl.BlockSpec((1, embed_dim), lambda i: (0, 0)),
            pl.BlockSpec((embed_dim, k_pad), lambda i: (0, 0)),
            pl.BlockSpec((k_pad, embed_dim), lambda i: (0, 0)),
        ],
        out_specs=out_specs,
        out_shape=out_shape,
        compiler_params=pltpu.CompilerParams(
            dimension_semantics=tuple(dimension_semantics),
            vmem_limit_bytes=32 * 1024 * 1024),
    )(x, w_t, b2, c_norm_t, centers_pad)

    if emit_soft_assign:
        fuzzy_pad, soft_pad, ent_parts = outs
        soft_assign = soft_pad[:B, :num_clusters]
    else:
        fuzzy_pad, ent_parts = outs
        soft_assign = None

    fuzzy = fuzzy_pad[:B]
    entropy = jnp.sum(ent_parts) / B
    return fuzzy, soft_assign, entropy


def _reference(x, proj_w, proj_b, centers, temperature=0.1):
    x_embed = x @ proj_w.T + proj_b
    x_embed = x_embed / jnp.maximum(
        jnp.linalg.norm(x_embed, axis=-1, keepdims=True), 1e-12)
    c_norm = centers / jnp.maximum(
        jnp.linalg.norm(centers, axis=-1, keepdims=True), 1e-12)
    sim = x_embed @ c_norm.T
    soft = jax.nn.softmax(sim / temperature, axis=-1)
    fuzzy = soft @ centers
    fuzzy = fuzzy / jnp.maximum(
        jnp.linalg.norm(fuzzy, axis=-1, keepdims=True), 1e-12)
    ent = -(soft * jnp.log(soft + 1e-8)).sum(axis=1).mean()
    return fuzzy, soft, ent


if __name__ == "__main__":
    B, input_dim, num_clusters, embed_dim = 8, 32, 5, 256
    temperature = 0.1

    key = jax.random.PRNGKey(0)
    k_x, k_c, k_w, k_b = jax.random.split(key, 4)

    x = jax.random.normal(k_x, (B, input_dim), dtype=jnp.float32)
    # Deterministic parameter init (synthetic, not a checkpoint):
    cluster_centers = jax.random.normal(k_c, (num_clusters, embed_dim),
                                        dtype=jnp.float32)
    bound = 1.0 / (input_dim ** 0.5)
    proj_w = jax.random.uniform(k_w, (embed_dim, input_dim),
                                minval=-bound, maxval=bound, dtype=jnp.float32)
    proj_b = jax.random.uniform(k_b, (embed_dim,),
                                minval=-bound, maxval=bound, dtype=jnp.float32)

    # One-time parameter prep (transpose, normalized+transposed centers,
    # lane-dense cluster padding).
    w_t, b2, c_norm_t, centers_pad, k = prepare_params(
        proj_w, proj_b, cluster_centers)

    fuzzy, soft_assign, entropy = fuzzy_embedding_forward(
        x, w_t, b2, c_norm_t, centers_pad, k, temperature)
    jax.block_until_ready((fuzzy, soft_assign, entropy))

    # Sanity check against a pure-JAX reference (torch semantics).
    f_ref, s_ref, e_ref = _reference(x, proj_w, proj_b, cluster_centers,
                                     temperature)
    assert fuzzy.shape == (B, embed_dim)
    assert soft_assign.shape == (B, num_clusters)
    assert jnp.allclose(fuzzy, f_ref, atol=1e-5, rtol=1e-4)
    assert jnp.allclose(soft_assign, s_ref, atol=1e-5, rtol=1e-4)
    assert jnp.allclose(entropy, e_ref, atol=1e-5, rtol=1e-4)

    print("KERNEL_OK")
</pallas_src>

<mosaic_0001>
module attributes {stable_mosaic.version = 11 : i64} {
  func.func @fuzzy_embedding_kernel(%arg0: i32, %arg1: memref<8x32xf32, #tpu.memory_space<vmem>>, %arg2: memref<32x256xf32, #tpu.memory_space<vmem>>, %arg3: memref<1x256xf32, #tpu.memory_space<vmem>>, %arg4: memref<256x128xf32, #tpu.memory_space<vmem>>, %arg5: memref<128x256xf32, #tpu.memory_space<vmem>>, %arg6: memref<8x256xf32, #tpu.memory_space<vmem>>, %arg7: memref<8x128xf32, #tpu.memory_space<vmem>>, %arg8: memref<1x1xf32, #tpu.memory_space<smem>>) attributes {dimension_semantics = [#tpu.dimension_semantics<parallel>], iteration_bounds = array<i64: 1>, scalar_prefetch = 0 : i64, scratch_operands = 0 : i64, tpu.core_type = #tpu.core_type<tc>, window_params = [{transform_indices = @transform_0, window_bounds = array<i64: 8, 32>}, {pipeline_mode = #tpu.pipeline_mode<synchronous>, transform_indices = @transform_1, window_bounds = array<i64: 32, 256>}, {pipeline_mode = #tpu.pipeline_mode<synchronous>, transform_indices = @transform_2, window_bounds = array<i64: 1, 256>}, {pipeline_mode = #tpu.pipeline_mode<synchronous>, transform_indices = @transform_3, window_bounds = array<i64: 256, 128>}, {pipeline_mode = #tpu.pipeline_mode<synchronous>, transform_indices = @transform_4, window_bounds = array<i64: 128, 256>}, {transform_indices = @transform_5, window_bounds = array<i64: 8, 256>}, {transform_indices = @transform_6, window_bounds = array<i64: 8, 128>}, {transform_indices = @transform_7, window_bounds = array<i64: 1, 1>}]} {
    %c0 = arith.constant 0 : index
    %c0_0 = arith.constant 0 : index
    %0 = vector.load %arg1[%c0, %c0_0] : memref<8x32xf32, #tpu.memory_space<vmem>>, vector<8x32xf32>
    %c0_1 = arith.constant 0 : index
    %c0_2 = arith.constant 0 : index
    %1 = vector.load %arg2[%c0_1, %c0_2] : memref<32x256xf32, #tpu.memory_space<vmem>>, vector<32x256xf32>
    %c0_3 = arith.constant 0 : index
    %c0_4 = arith.constant 0 : index
    %2 = vector.load %arg3[%c0_3, %c0_4] : memref<1x256xf32, #tpu.memory_space<vmem>>, vector<1x256xf32>
    %c0_5 = arith.constant 0 : index
    %c0_6 = arith.constant 0 : index
    %3 = vector.load %arg4[%c0_5, %c0_6] : memref<256x128xf32, #tpu.memory_space<vmem>>, vector<256x128xf32>
    %c0_7 = arith.constant 0 : index
    %c0_8 = arith.constant 0 : index
    %4 = vector.load %arg5[%c0_7, %c0_8] : memref<128x256xf32, #tpu.memory_space<vmem>>, vector<128x256xf32>
    %cst = arith.constant dense<0.000000e+00> : vector<8x256xf32>
    %5 = tpu.matmul %0, %1, %cst {dimension_numbers = #tpu.dot_dimension_numbers<[1], [0], [0], [1], [0, 0, 1, 1], [], []>} : vector<8x32xf32>, vector<32x256xf32>, vector<8x256xf32> -> vector<8x256xf32>
    %6 = vector.broadcast %2 : vector<1x256xf32> to vector<8x256xf32>
    %7 = arith.addf %5, %6 : vector<8x256xf32>
    %8 = arith.mulf %7, %7 : vector<8x256xf32>
    %cst_9 = arith.constant dense<0.000000e+00> : vector<8xf32>
    %9 = vector.multi_reduction <add>, %8, %cst_9 [1] : vector<8x256xf32> to vector<8xf32>
    %10 = vector.shape_cast %9 : vector<8xf32> to vector<8x1xf32>
    %cst_10 = arith.constant 1.000000e-24 : f32
    %11 = vector.broadcast %cst_10 : f32 to vector<8x1xf32>
    %12 = arith.maximumf %10, %11 : vector<8x1xf32>
    %13 = math.rsqrt %12 : vector<8x1xf32>
    %14 = vector.broadcast %13 : vector<8x1xf32> to vector<8x256xf32>
    %15 = arith.mulf %7, %14 : vector<8x256xf32>
    %cst_11 = arith.constant dense<0.000000e+00> : vector<8x128xf32>
    %16 = tpu.matmul %15, %3, %cst_11 {dimension_numbers = #tpu.dot_dimension_numbers<[1], [0], [0], [1], [0, 0, 1, 1], [], []>} : vector<8x256xf32>, vector<256x128xf32>, vector<8x128xf32> -> vector<8x128xf32>
    %17 = tpu.iota {dimensions = array<i32: 1>} : vector<8x128xi32>
    %c5_i32 = arith.constant 5 : i32
    %18 = vector.broadcast %c5_i32 : i32 to vector<8x128xi32>
    %19 = arith.cmpi slt, %17, %18 : vector<8x128xi32>
    %cst_12 = arith.constant 1.000000e+01 : f32
    %20 = vector.broadcast %cst_12 : f32 to vector<8x128xf32>
    %21 = arith.mulf %16, %20 : vector<8x128xf32>
    %cst_13 = arith.constant -1.000000e+30 : f32
    %22 = vector.broadcast %cst_13 : f32 to vector<8x128xf32>
    %23 = arith.select %19, %21, %22 : vector<8x128xi1>, vector<8x128xf32>
    %24 = math.exp %23 : vector<8x128xf32>
    %cst_14 = arith.constant dense<0.000000e+00> : vector<8xf32>
    %25 = vector.multi_reduction <add>, %24, %cst_14 [1] : vector<8x128xf32> to vector<8xf32>
    %26 = vector.shape_cast %25 : vector<8xf32> to vector<8x1xf32>
    %27 = tpu.reciprocal %26 : vector<8x1xf32> -> vector<8x1xf32>
    %28 = vector.broadcast %27 : vector<8x1xf32> to vector<8x128xf32>
    %29 = arith.mulf %24, %28 : vector<8x128xf32>
    %cst_15 = arith.constant dense<0.000000e+00> : vector<8x256xf32>
    %30 = tpu.matmul %29, %4, %cst_15 {dimension_numbers = #tpu.dot_dimension_numbers<[1], [0], [0], [1], [0, 0, 1, 1], [], []>} : vector<8x128xf32>, vector<128x256xf32>, vector<8x256xf32> -> vector<8x256xf32>
    %31 = arith.mulf %30, %30 : vector<8x256xf32>
    %cst_16 = arith.constant dense<0.000000e+00> : vector<8xf32>
    %32 = vector.multi_reduction <add>, %31, %cst_16 [1] : vector<8x256xf32> to vector<8xf32>
    %33 = vector.shape_cast %32 : vector<8xf32> to vector<8x1xf32>
    %cst_17 = arith.constant 1.000000e-24 : f32
    %34 = vector.broadcast %cst_17 : f32 to vector<8x1xf32>
    %35 = arith.maximumf %33, %34 : vector<8x1xf32>
    %36 = math.rsqrt %35 : vector<8x1xf32>
    %37 = vector.broadcast %36 : vector<8x1xf32> to vector<8x256xf32>
    %38 = arith.mulf %30, %37 : vector<8x256xf32>
    %39 = math.log %26 : vector<8x1xf32>
    %40 = vector.broadcast %39 : vector<8x1xf32> to vector<8x128xf32>
    %41 = arith.subf %23, %40 : vector<8x128xf32>
    %42 = arith.mulf %29, %41 : vector<8x128xf32>
    %cst_18 = arith.constant 0.000000e+00 : f32
    %43 = vector.broadcast %cst_18 : f32 to vector<8x128xf32>
    %44 = arith.select %19, %42, %43 : vector<8x128xi1>, vector<8x128xf32>
    %cst_19 = arith.constant dense<0.000000e+00> : vector<8xf32>
    %45 = vector.multi_reduction <add>, %44, %cst_19 [1] : vector<8x128xf32> to vector<8xf32>
    %46 = vector.shape_cast %45 : vector<8xf32> to vector<8x1xf32>
    %cst_20 = arith.constant 0.000000e+00 : f32
    %47 = vector.broadcast %cst_20 : f32 to vector<8x1xf32>
    %48 = arith.subf %47, %46 : vector<8x1xf32>
    %49 = tpu.iota {dimensions = array<i32: 0>} : vector<8x1xi32>
    %c8_i32 = arith.constant 8 : i32
    %50 = arith.muli %arg0, %c8_i32 : i32
    %51 = vector.broadcast %50 : i32 to vector<8x1xi32>
    %52 = arith.addi %49, %51 : vector<8x1xi32>
    %c8_i32_21 = arith.constant 8 : i32
    %53 = vector.broadcast %c8_i32_21 : i32 to vector<8x1xi32>
    %54 = arith.cmpi slt, %52, %53 : vector<8x1xi32>
    %cst_22 = arith.constant 0.000000e+00 : f32
    %55 = vector.broadcast %cst_22 : f32 to vector<8x1xf32>
    %56 = arith.select %54, %48, %55 : vector<8x1xi1>, vector<8x1xf32>
    %c0_23 = arith.constant 0 : index
    %c0_24 = arith.constant 0 : index
    %57 = vector.load %arg6[%c0_23, %c0_24] : memref<8x256xf32, #tpu.memory_space<vmem>>, vector<8x256xf32>
    tpu.vector_store %arg6[%c0_23, %c0_24], %38 {strides = array<i32>} : memref<8x256xf32, #tpu.memory_space<vmem>>, vector<8x256xf32>,
    %c0_25 = arith.constant 0 : index
    %c0_26 = arith.constant 0 : index
    %58 = vector.load %arg7[%c0_25, %c0_26] : memref<8x128xf32, #tpu.memory_space<vmem>>, vector<8x128xf32>
    tpu.vector_store %arg7[%c0_25, %c0_26], %29 {strides = array<i32>} : memref<8x128xf32, #tpu.memory_space<vmem>>, vector<8x128xf32>,
    %59 = vector.shape_cast %56 : vector<8x1xf32> to vector<1x8x1xf32>
    %cst_27 = arith.constant dense<0.000000e+00> : vector<1xf32>
    %60 = vector.multi_reduction <add>, %59, %cst_27 [1, 2] : vector<1x8x1xf32> to vector<1xf32>
    %61 = vector.shape_cast %60 : vector<1xf32> to vector<1x1x1xf32>
    %62 = vector.extract %61[0, 0, 0] : f32 from vector<1x1x1xf32>
    %c0_28 = arith.constant 0 : index
    %c0_29 = arith.constant 0 : index
    %63 = memref.load %arg8[%c0_28, %c0_29] : memref<1x1xf32, #tpu.memory_space<smem>>
    memref.store %62, %arg8[%c0_28, %c0_29] : memref<1x1xf32, #tpu.memory_space<smem>>
    return
  }
  func.func @transform_0(%arg0: i32) -> (i32, i32) {
    %c0_i32 = arith.constant 0 : i32
    %c0_i32_0 = arith.constant 0 : i32
    return %arg0, %c0_i32 : i32, i32
  }
  func.func @transform_1(%arg0: i32) -> (i32, i32) {
    %c0_i32 = arith.constant 0 : i32
    %c0_i32_0 = arith.constant 0 : i32
    %c0_i32_1 = arith.constant 0 : i32
    return %c0_i32, %c0_i32_0 : i32, i32
  }
  func.func @transform_2(%arg0: i32) -> (i32, i32) {
    %c0_i32 = arith.constant 0 : i32
    %c0_i32_0 = arith.constant 0 : i32
    %c0_i32_1 = arith.constant 0 : i32
    return %c0_i32, %c0_i32_0 : i32, i32
  }
  func.func @transform_3(%arg0: i32) -> (i32, i32) {
    %c0_i32 = arith.constant 0 : i32
    %c0_i32_0 = arith.constant 0 : i32
    %c0_i32_1 = arith.constant 0 : i32
    return %c0_i32, %c0_i32_0 : i32, i32
  }
  func.func @transform_4(%arg0: i32) -> (i32, i32) {
    %c0_i32 = arith.constant 0 : i32
    %c0_i32_0 = arith.constant 0 : i32
    %c0_i32_1 = arith.constant 0 : i32
    return %c0_i32, %c0_i32_0 : i32, i32
  }
  func.func @transform_5(%arg0: i32) -> (i32, i32) {
    %c0_i32 = arith.constant 0 : i32
    %c0_i32_0 = arith.constant 0 : i32
    return %arg0, %c0_i32 : i32, i32
  }
  func.func @transform_6(%arg0: i32) -> (i32, i32) {
    %c0_i32 = arith.constant 0 : i32
    %c0_i32_0 = arith.constant 0 : i32
    return %arg0, %c0_i32 : i32, i32
  }
  func.func @transform_7(%arg0: i32) -> (i32, i32) {
    %c0_i32 = arith.constant 0 : i32
    %c0_i32_0 = arith.constant 0 : i32
    return %arg0, %c0_i32 : i32, i32
  }
}

</mosaic_0001>

<llo_original>
// kernel: tpu_custom_call.1
$region0: #{tpu_custom_call.1}
  #allocation0 [shape = 'u32[]', space=smem, size = 0x4, offset = 0x4, fixed_abs, tag = 'smem constant byte address 0x4 - core index']
  #allocation1 [shape = 'u32[72,128]{1,0:T(1,128)}', space=vmem, size = 0x9000, scoped, tag = 'internal scratch']
  %s0 = inlined_call_operand.hbm [shape: f32[8,32], index: 0, kind: input, shape index: {}]
  %s1 = inlined_call_operand.hbm [shape: f32[32,256], index: 1, kind: input, shape index: {}]
  %s2 = inlined_call_operand.hbm [shape: f32[1,256], index: 2, kind: input, shape index: {}]
  %s3 = inlined_call_operand.hbm [shape: f32[256,128], index: 3, kind: input, shape index: {}]
  %s4 = inlined_call_operand.hbm [shape: f32[128,256], index: 4, kind: input, shape index: {}]
  %s5 = inlined_call_operand.hbm [shape: f32[8,256], index: 5, kind: output, shape index: {0}]
  %s6 = inlined_call_operand.hbm [shape: f32[8,128], index: 6, kind: output, shape index: {1}]
  %s7 = inlined_call_operand.hbm [shape: f32[1,1], index: 7, kind: output, shape index: {2}]
  %8 = xla_tuple %s5, %s6, %s7
  %s9 = sld [smem:[#allocation0]]
  $region66: #{tpu_custom_call.1} parent=0
    _
  %s11 = ssub.s32 1, %s9
  %s12 = scalar_select 0, %s11, %s9
  $region1: #{tpu_custom_call.1} parent=0
    #allocation2 [shape = 'u8[4096]{0}', space=vmem, size = 0x1000, scoped, tag = 'input window, operand 0, single buffered']
    #allocation3 [shape = 's32[1]{0}', space=sflag, size = 0x4, scoped, tag = 'scoped memory for tpu_custom_call.1']
    #allocation4 [shape = 's32[1]{0}', space=sflag, size = 0x4, scoped, tag = 'scoped memory for tpu_custom_call.1']
    #allocation5 [shape = 's32[1]{0}', space=sflag, size = 0x4, scoped, tag = 'scoped memory for tpu_custom_call.1']
    #allocation6 [shape = 'u8[32768]{0}', space=vmem, size = 0x8000, scoped, tag = 'input window, operand 1, single buffered']
    #allocation7 [shape = 's32[1]{0}', space=sflag, size = 0x4, scoped, tag = 'scoped memory for tpu_custom_call.1']
    #allocation8 [shape = 'u8[1024]{0}', space=vmem, size = 0x400, scoped, tag = 'input window, operand 2, single buffered']
    #allocation9 [shape = 'u8[131072]{0}', space=vmem, size = 0x20000, scoped, tag = 'input window, operand 3, single buffered']
    #allocation10 [shape = 's32[1]{0}', space=sflag, size = 0x4, scoped, tag = 'scoped memory for tpu_custom_call.1']
    #allocation11 [shape = 'u8[131072]{0}', space=vmem, size = 0x20000, scoped, tag = 'input window, operand 4, single buffered']
    #allocation12 [shape = 'u8[8192]{0}', space=vmem, size = 0x2000, scoped, tag = 'output window, operand 0, single buffered']
    #allocation13 [shape = 'u8[4096]{0}', space=vmem, size = 0x1000, scoped, tag = 'output window, operand 1, single buffered']
    #allocation14 [shape = 's32[1]{0}', space=sflag, size = 0x4, scoped, tag = 'scoped memory for tpu_custom_call.1']
    #allocation15 [shape = 'u8[512]{0}', space=smem, size = 0x200, scoped, tag = 'output window, operand 2, single buffered']
    %13 = vsyncpa [#allocation3], 0
    %14 = vsyncpa [#allocation7], 0
    %15 = vsyncpa [#allocation10], 0
    %16 = vsyncpa [#allocation4], 0
    %17 = vsyncpa [#allocation14], 0
    %18 = vsyncpa [#allocation5], 0
    // Predicated region
    $region2: #{tpu_custom_call.1} parent=1 // pred_check
      _
    $region3: #{tpu_custom_call.1} parent=1 // pred_check_branch
      %20 = sbr.rel (0) target = $region5
    $region4: #{tpu_custom_call.1} parent=1 // pred_region
      %22 = vsyncadd [#allocation3], 0
      %s24 = sshll.u32 %s0, 4
      %s25 = int_to_ptr.hbm [resolvable:$true] %s24
      %s26 = sshll.u32 [#allocation2], 4
      %s27 = int_to_ptr.vmem [resolvable:$true] %s26
      %29 = dma.hbm_to_vmem [thread:$0]  %s25, 128, %s27, [#allocation3]
    $region5: #{tpu_custom_call.1} parent=1 // pred_fallthru
      _
    // Predicated region
    $region6: #{tpu_custom_call.1} parent=1 // pred_check
      _
    $region7: #{tpu_custom_call.1} parent=1 // pred_check_branch
      %31 = sbr.rel (0) target = $region9
    $region8: #{tpu_custom_call.1} parent=1 // pred_region
      %33 = vsyncadd [#allocation7], 0
      %s34 = sshll.u32 %s1, 4
      %s35 = int_to_ptr.hbm [resolvable:$true] %s34
      %s36 = sshll.u32 [#allocation6], 4
      %s37 = int_to_ptr.vmem [resolvable:$true] %s36
      %42 = dma.hbm_to_vmem [thread:$0]  %s35, 1024, %s37, [#allocation7], 256, 256, 16
    $region9: #{tpu_custom_call.1} parent=1 // pred_fallthru
      _
    // Predicated region
    $region10: #{tpu_custom_call.1} parent=1 // pred_check
      _
    $region11: #{tpu_custom_call.1} parent=1 // pred_check_branch
      %44 = sbr.rel (0) target = $region13
    $region12: #{tpu_custom_call.1} parent=1 // pred_region
      %46 = vsyncadd [#allocation7], 0
      %s48 = sshll.u32 %s2, 4
      %s49 = int_to_ptr.hbm [resolvable:$true] %s48
      %s50 = sshll.u32 [#allocation8], 4
      %s51 = int_to_ptr.vmem [resolvable:$true] %s50
      %53 = dma.hbm_to_vmem [thread:$0]  %s49, 32, %s51, [#allocation7]
    $region13: #{tpu_custom_call.1} parent=1 // pred_fallthru
      _
    // Predicated region
    $region14: #{tpu_custom_call.1} parent=1 // pred_check
      _
    $region15: #{tpu_custom_call.1} parent=1 // pred_check_branch
      %55 = sbr.rel (0) target = $region17
    $region16: #{tpu_custom_call.1} parent=1 // pred_region
      %57 = vsyncadd [#allocation10], 0
      %s58 = sshll.u32 %s3, 4
      %s59 = int_to_ptr.hbm [resolvable:$true] %s58
      %s60 = sshll.u32 [#allocation9], 4
      %s61 = int_to_ptr.vmem [resolvable:$true] %s60
      %66 = dma.hbm_to_vmem [thread:$0]  %s59, 4096, %s61, [#allocation10], 128, 128, 8
    $region17: #{tpu_custom_call.1} parent=1 // pred_fallthru
      _
    // Predicated region
    $region18: #{tpu_custom_call.1} parent=1 // pred_check
      _
    $region19: #{tpu_custom_call.1} parent=1 // pred_check_branch
      %68 = sbr.rel (0) target = $region21
    $region20: #{tpu_custom_call.1} parent=1 // pred_region
      %70 = vsyncadd [#allocation10], 0
      %s71 = sshll.u32 %s4, 4
      %s72 = int_to_ptr.hbm [resolvable:$true] %s71
      %s73 = sshll.u32 [#allocation11], 4
      %s74 = int_to_ptr.vmem [resolvable:$true] %s73
      %79 = dma.hbm_to_vmem [thread:$0]  %s72, 4096, %s74, [#allocation10], 256, 256, 16
    $region21: #{tpu_custom_call.1} parent=1 // pred_fallthru
      _
    // Predicated region
    $region22: #{tpu_custom_call.1} parent=1 // pred_check
      _
    $region23: #{tpu_custom_call.1} parent=1 // pred_check_branch
      %81 = sbr.rel (0) target = $region25
    $region24: #{tpu_custom_call.1} parent=1 // pred_region
      %83 = dma.done [#allocation3], 128
    $region25: #{tpu_custom_call.1} parent=1 // pred_fallthru
      _
    // Predicated region
    $region26: #{tpu_custom_call.1} parent=1 // pred_check
      _
    $region27: #{tpu_custom_call.1} parent=1 // pred_check_branch
      %85 = sbr.rel (0) target = $region29
    $region28: #{tpu_custom_call.1} parent=1 // pred_region
      %87 = dma.done [#allocation7], 1024
    $region29: #{tpu_custom_call.1} parent=1 // pred_fallthru
      _
    // Predicated region
    $region30: #{tpu_custom_call.1} parent=1 // pred_check
      _
    $region31: #{tpu_custom_call.1} parent=1 // pred_check_branch
      %89 = sbr.rel (0) target = $region33
    $region32: #{tpu_custom_call.1} parent=1 // pred_region
      %91 = dma.done [#allocation7], 32
    $region33: #{tpu_custom_call.1} parent=1 // pred_fallthru
      _
    // Predicated region
    $region34: #{tpu_custom_call.1} parent=1 // pred_check
      _
    $region35: #{tpu_custom_call.1} parent=1 // pred_check_branch
      %93 = sbr.rel (0) target = $region37
    $region36: #{tpu_custom_call.1} parent=1 // pred_region
      %95 = dma.done [#allocation10], 4096
    $region37: #{tpu_custom_call.1} parent=1 // pred_fallthru
      _
    // Predicated region
    $region38: #{tpu_custom_call.1} parent=1 // pred_check
      _
    $region39: #{tpu_custom_call.1} parent=1 // pred_check_branch
      %97 = sbr.rel (0) target = $region41
    $region40: #{tpu_custom_call.1} parent=1 // pred_region
      %99 = dma.done [#allocation10], 4096
    $region41: #{tpu_custom_call.1} parent=1 // pred_fallthru
      _
    %v100 = vld [vmem:[#allocation2] sm:$0xff]
    %v101 = vld [vmem:[#allocation6] sm:$0xff]
    %v102 = vld [vmem:[#allocation6 + $0x8] sm:$0xff]
    %v103 = vld [vmem:[#allocation6 + $0x10] sm:$0xff]
    %v104 = vld [vmem:[#allocation6 + $0x18] sm:$0xff]
    %v105 = vld [vmem:[#allocation6 + $0x20] sm:$0xff]
    %v106 = vld [vmem:[#allocation6 + $0x28] sm:$0xff]
    %v107 = vld [vmem:[#allocation6 + $0x30] sm:$0xff]
    %v108 = vld [vmem:[#allocation6 + $0x38] sm:$0xff]
    %v109 = vld [vmem:[#allocation8] sm:$0x3]
    %v110 = vld [vmem:[#allocation9] sm:$0xff]
    %v111 = vld [vmem:[#allocation9 + $0x8] sm:$0xff]
    %v112 = vld [vmem:[#allocation9 + $0x10] sm:$0xff]
    %v113 = vld [vmem:[#allocation9 + $0x18] sm:$0xff]
    %v114 = vld [vmem:[#allocation9 + $0x20] sm:$0xff]
    %v115 = vld [vmem:[#allocation9 + $0x28] sm:$0xff]
    %v116 = vld [vmem:[#allocation9 + $0x30] sm:$0xff]
    %v117 = vld [vmem:[#allocation9 + $0x38] sm:$0xff]
    %v118 = vld [vmem:[#allocation9 + $0x40] sm:$0xff]
    %v119 = vld [vmem:[#allocation9 + $0x48] sm:$0xff]
    %v120 = vld [vmem:[#allocation9 + $0x50] sm:$0xff]
    %v121 = vld [vmem:[#allocation9 + $0x58] sm:$0xff]
    %v122 = vld [vmem:[#allocation9 + $0x60] sm:$0xff]
    %v123 = vld [vmem:[#allocation9 + $0x68] sm:$0xff]
    %v124 = vld [vmem:[#allocation9 + $0x70] sm:$0xff]
    %v125 = vld [vmem:[#allocation9 + $0x78] sm:$0xff]
    %v126 = vld [vmem:[#allocation9 + $0x80] sm:$0xff]
    %v127 = vld [vmem:[#allocation9 + $0x88] sm:$0xff]
    %v128 = vld [vmem:[#allocation9 + $0x90] sm:$0xff]
    %v129 = vld [vmem:[#allocation9 + $0x98] sm:$0xff]
    %v130 = vld [vmem:[#allocation9 + $0xa0] sm:$0xff]
    %v131 = vld [vmem:[#allocation9 + $0xa8] sm:$0xff]
    %v132 = vld [vmem:[#allocation9 + $0xb0] sm:$0xff]
    %v133 = vld [vmem:[#allocation9 + $0xb8] sm:$0xff]
    %v134 = vld [vmem:[#allocation9 + $0xc0] sm:$0xff]
    %v135 = vld [vmem:[#allocation9 + $0xc8] sm:$0xff]
    %v136 = vld [vmem:[#allocation9 + $0xd0] sm:$0xff]
    %v137 = vld [vmem:[#allocation9 + $0xd8] sm:$0xff]
    %v138 = vld [vmem:[#allocation9 + $0xe0] sm:$0xff]
    %v139 = vld [vmem:[#allocation9 + $0xe8] sm:$0xff]
    %v140 = vld [vmem:[#allocation9 + $0xf0] sm:$0xff]
    %v141 = vld [vmem:[#allocation9 + $0xf8] sm:$0xff]
    %v142 = vld [vmem:[#allocation11] sm:$0xff]
    %v143 = vld [vmem:[#allocation11 + $0x8] sm:$0xff]
    %v144 = vld [vmem:[#allocation11 + $0x10] sm:$0xff]
    %v145 = vld [vmem:[#allocation11 + $0x18] sm:$0xff]
    %v146 = vld [vmem:[#allocation11 + $0x20] sm:$0xff]
    %v147 = vld [vmem:[#allocation11 + $0x28] sm:$0xff]
    %v148 = vld [vmem:[#allocation11 + $0x30] sm:$0xff]
    %v149 = vld [vmem:[#allocation11 + $0x38] sm:$0xff]
    %v150 = vld [vmem:[#allocation11 + $0x40] sm:$0xff]
    %v151 = vld [vmem:[#allocation11 + $0x48] sm:$0xff]
    %v152 = vld [vmem:[#allocation11 + $0x50] sm:$0xff]
    %v153 = vld [vmem:[#allocation11 + $0x58] sm:$0xff]
    %v154 = vld [vmem:[#allocation11 + $0x60] sm:$0xff]
    %v155 = vld [vmem:[#allocation11 + $0x68] sm:$0xff]
    %v156 = vld [vmem:[#allocation11 + $0x70] sm:$0xff]
    %v157 = vld [vmem:[#allocation11 + $0x78] sm:$0xff]
    %v158 = vld [vmem:[#allocation11 + $0x80] sm:$0xff]
    %v159 = vld [vmem:[#allocation11 + $0x88] sm:$0xff]
    %v160 = vld [vmem:[#allocation11 + $0x90] sm:$0xff]
    %v161 = vld [vmem:[#allocation11 + $0x98] sm:$0xff]
    %v162 = vld [vmem:[#allocation11 + $0xa0] sm:$0xff]
    %v163 = vld [vmem:[#allocation11 + $0xa8] sm:$0xff]
    %v164 = vld [vmem:[#allocation11 + $0xb0] sm:$0xff]
    %v165 = vld [vmem:[#allocation11 + $0xb8] sm:$0xff]
    %v166 = vld [vmem:[#allocation11 + $0xc0] sm:$0xff]
    %v167 = vld [vmem:[#allocation11 + $0xc8] sm:$0xff]
    %v168 = vld [vmem:[#allocation11 + $0xd0] sm:$0xff]
    %v169 = vld [vmem:[#allocation11 + $0xd8] sm:$0xff]
    %v170 = vld [vmem:[#allocation11 + $0xe0] sm:$0xff]
    %v171 = vld [vmem:[#allocation11 + $0xe8] sm:$0xff]
    %v172 = vld [vmem:[#allocation11 + $0xf0] sm:$0xff]
    %v173 = vld [vmem:[#allocation11 + $0xf8] sm:$0xff]
    %v175 = vperm.slane %v109, 0
    %v176 = vperm.slane %v109, 1
    %vm179 = vcmask 261120
    %v181 = vsel %vm179, %v100, 0
    %183 = vmatpush.msra.mxu0 0.0
    %184 = vmatpush.msra.mxu0 0.0
    %185 = vmatpush.msra.mxu0 0.0
    %186 = vmatpush.msra.mxu0 0.0
    %187 = vmatpush.msra.mxu0 0.0
    %188 = vmatpush.msra.mxu0 0.0
    %189 = vmatpush.msra.mxu0 0.0
    %190 = vmatpush.msra.mxu0 0.0
    %191 = vmatpush.msra.mxu0 0.0
    %192 = vmatpush.msra.mxu0 0.0
    %193 = vmatpush.msra.mxu0 0.0
    %194 = vmatpush.msra.mxu0 0.0
    %195 = vmatpush.msra.mxu0 %v107
    %196 = vmatpush.msra.mxu0 %v105
    %197 = vmatpush.msra.mxu0 %v103
    %198 = vmatpush.msra.mxu0 %v101
    %199 = vmatmul.f32.gmra.mxu0 %v181
    %v200 = vpop.f32.mrf.mxu0
    %v201 = vadd.f32 %v175, %v200
    %202 = vdwg.mxu0
    %203 = vmatpush.msra.mxu0 0.0
    %204 = vmatpush.msra.mxu0 0.0
    %205 = vmatpush.msra.mxu0 0.0
    %206 = vmatpush.msra.mxu0 0.0
    %207 = vmatpush.msra.mxu0 0.0
    %208 = vmatpush.msra.mxu0 0.0
    %209 = vmatpush.msra.mxu0 0.0
    %210 = vmatpush.msra.mxu0 0.0
    %211 = vmatpush.msra.mxu0 0.0
    %212 = vmatpush.msra.mxu0 0.0
    %213 = vmatpush.msra.mxu0 0.0
    %214 = vmatpush.msra.mxu0 0.0
    %215 = vmatpush.msra.mxu0 %v108
    %216 = vmatpush.msra.mxu0 %v106
    %217 = vmatpush.msra.mxu0 %v104
    %218 = vmatpush.msra.mxu0 %v102
    %219 = vmatmul.f32.gmra.mxu0 %v181
    %v220 = vpop.f32.mrf.mxu0
    %v221 = vadd.f32 %v176, %v220
    %222 = vdwg.mxu0
    %v223 = vmul.f32 %v201, %v201
    %v224 = vmul.f32 %v221, %v221
    %v225 = vadd.f32 %v223, %v224
    %226 = vadd.xlane.f32.xlu0 %v225
    %v227 = vpop.xlane.xlu0 %226
    %v228 = vmax.f32 %v227, 1e-24
    %v229 = vrsqrt.pop %v228
    %v230 = vmul.f32 %v229, %v228
    %v231 = vmul.f32 %v230, %v229
    %v232 = vmul.f32 0.5, %v231
    %v233 = vsub.f32 1.5, %v232
    %v234 = vmul.f32 %v229, %v233
    %vm235 = vweird.f32 %v228
    %vm236 = vweird.f32 %v229
    %vm237 = vmor %vm235, %vm236
    %v238 = vsel %vm237, %v229, %v234
    %v239 = vmul.f32 %v201, %v238
    %v240 = vmul.f32 %v221, %v238
    %241 = vmatpush.msra.mxu0 %v125
    %242 = vmatpush.msra.mxu0 %v124
    %243 = vmatpush.msra.mxu0 %v123
    %244 = vmatpush.msra.mxu0 %v122
    %245 = vmatpush.msra.mxu0 %v121
    %246 = vmatpush.msra.mxu0 %v120
    %247 = vmatpush.msra.mxu0 %v119
    %248 = vmatpush.msra.mxu0 %v118
    %249 = vmatpush.msra.mxu0 %v117
    %250 = vmatpush.msra.mxu0 %v116
    %251 = vmatpush.msra.mxu0 %v115
    %252 = vmatpush.msra.mxu0 %v114
    %253 = vmatpush.msra.mxu0 %v113
    %254 = vmatpush.msra.mxu0 %v112
    %255 = vmatpush.msra.mxu0 %v111
    %256 = vmatpush.msra.mxu0 %v110
    %257 = vmatmul.f32.gmra.mxu0 %v239
    %v258 = vpop.f32.mrf.mxu0
    %v259 = vadd.f32 0.0, %v258
    %260 = vdwg.mxu0
    %261 = vmatpush.msra.mxu0 %v141
    %262 = vmatpush.msra.mxu0 %v140
    %263 = vmatpush.msra.mxu0 %v139
    %264 = vmatpush.msra.mxu0 %v138
    %265 = vmatpush.msra.mxu0 %v137
    %266 = vmatpush.msra.mxu0 %v136
    %267 = vmatpush.msra.mxu0 %v135
    %268 = vmatpush.msra.mxu0 %v134
    %269 = vmatpush.msra.mxu0 %v133
    %270 = vmatpush.msra.mxu0 %v132
    %271 = vmatpush.msra.mxu0 %v131
    %272 = vmatpush.msra.mxu0 %v130
    %273 = vmatpush.msra.mxu0 %v129
    %274 = vmatpush.msra.mxu0 %v128
    %275 = vmatpush.msra.mxu0 %v127
    %276 = vmatpush.msra.mxu0 %v126
    %277 = vmatmul.f32.gmra.mxu0 %v240
    %v278 = vpop.f32.mrf.mxu0
    %v279 = vadd.f32 %v259, %v278
    %280 = vdwg.mxu0
    %v281 = vlaneseq
    %v282 = vand.u32 %v281, 127
    %vm283 = vcmp.lt.s32.totalorder %v282, 5
    %v284 = vmul.f32 %v279, 10.0
    %v285 = vsel %vm283, %v284, -1e+30
    %v286 = vmul.f32 %v285, 1.442695
    %v287 = vpow.pop %v286
    %288 = vadd.xlane.f32.xlu0 %v287
    %v289 = vpop.xlane.xlu0 %288
    %v290 = vrcp.pop %v289
    %v291 = vmul.f32 %v289, %v290
    %v292 = vsub.f32 1.0, %v291
    %v293 = vmul.f32 %v290, %v292
    %v294 = vadd.f32 %v290, %v293
    %vm295 = vweird.f32 %v289
    %vm296 = vweird.f32 %v290
    %vm297 = vmor %vm295, %vm296
    %v298 = vsel %vm297, %v290, %v294
    %v299 = vand.u32 2147483647, %v289
    %vm300 = vcmp.eq.f32.partialorder %v299, 8.507059e+37
    %v301 = vand.u32 %v289, 2147483648
    %v302 = vor.u32 1.1754944e-38, %v301
    %v303 = vsel %vm300, %v302, %v298
    %v304 = vmul.f32 %v287, %v303
    %305 = vmatpush.msra.mxu0 %v172
    %306 = vmatpush.msra.mxu0 %v170
    %307 = vmatpush.msra.mxu0 %v168
    %308 = vmatpush.msra.mxu0 %v166
    %309 = vmatpush.msra.mxu0 %v164
    %310 = vmatpush.msra.mxu0 %v162
    %311 = vmatpush.msra.mxu0 %v160
    %312 = vmatpush.msra.mxu0 %v158
    %313 = vmatpush.msra.mxu0 %v156
    %314 = vmatpush.msra.mxu0 %v154
    %315 = vmatpush.msra.mxu0 %v152
    %316 = vmatpush.msra.mxu0 %v150
    %317 = vmatpush.msra.mxu0 %v148
    %318 = vmatpush.msra.mxu0 %v146
    %319 = vmatpush.msra.mxu0 %v144
    %320 = vmatpush.msra.mxu0 %v142
    %321 = vmatmul.f32.gmra.mxu0 %v304
    %v322 = vpop.f32.mrf.mxu0
    %v323 = vadd.f32 0.0, %v322
    %324 = vdwg.mxu0
    %325 = vmatpush.msra.mxu0 %v173
    %326 = vmatpush.msra.mxu0 %v171
    %327 = vmatpush.msra.mxu0 %v169
    %328 = vmatpush.msra.mxu0 %v167
    %329 = vmatpush.msra.mxu0 %v165
    %330 = vmatpush.msra.mxu0 %v163
    %331 = vmatpush.msra.mxu0 %v161
    %332 = vmatpush.msra.mxu0 %v159
    %333 = vmatpush.msra.mxu0 %v157
    %334 = vmatpush.msra.mxu0 %v155
    %335 = vmatpush.msra.mxu0 %v153
    %336 = vmatpush.msra.mxu0 %v151
    %337 = vmatpush.msra.mxu0 %v149
    %338 = vmatpush.msra.mxu0 %v147
    %339 = vmatpush.msra.mxu0 %v145
    %340 = vmatpush.msra.mxu0 %v143
    %341 = vmatmul.f32.gmra.mxu0 %v304
    %v342 = vpop.f32.mrf.mxu0
    %v343 = vadd.f32 0.0, %v342
    %344 = vdwg.mxu0
    %v345 = vmul.f32 %v323, %v323
    %v346 = vmul.f32 %v343, %v343
    %v347 = vadd.f32 %v345, %v346
    %348 = vadd.xlane.f32.xlu0 %v347
    %v349 = vpop.xlane.xlu0 %348
    %v350 = vmax.f32 %v349, 1e-24
    %v351 = vrsqrt.pop %v350
    %v352 = vmul.f32 %v351, %v350
    %v353 = vmul.f32 %v352, %v351
    %v354 = vmul.f32 0.5, %v353
    %v355 = vsub.f32 1.5, %v354
    %v356 = vmul.f32 %v351, %v355
    %vm357 = vweird.f32 %v350
    %vm358 = vweird.f32 %v351
    %vm359 = vmor %vm357, %vm358
    %v360 = vsel %vm359, %v351, %v356
    %v361 = vmul.f32 %v323, %v360
    %v362 = vmul.f32 %v343, %v360
    %v363 = vlog2.pop %v289
    %v364 = vmul.f32 %v363, 0.6931472
    %v365 = vsub.f32 %v285, %v364
    %v366 = vmul.f32 %v304, %v365
    %v367 = vsel %vm283, %v366, 0.0
    %368 = vadd.xlane.f32.xlu0 %v367
    %v369 = vpop.xlane.xlu0 %368
    %v370 = vsub.f32 0.0, %v369
    %v371 = vlaneseq
    %v372 = vshrl.u32 %v371, 7
    %s373 = smul.u32 0, 8
    %v374 = vstv %s373
    %v375 = vadd.s32 %v372, %v374
    %vm376 = vcmp.lt.s32.totalorder %v375, 8
    %v377 = vsel %vm376, %v370, 0.0
    %378 = vst [vmem:[#allocation12] sm:$0xff] %v361
    %379 = vst [vmem:[#allocation12 + $0x8] sm:$0xff] %v362
    %380 = vst [vmem:[#allocation13] sm:$0xff] %v304
    %vm381 = vcmask 7168
    %v382 = vsel %vm381, %v377, 0.0
    %383 = vadd.xlane.f32.xlu0 %v382
    %v384 = vpop.xlane.xlu0 %383
    %v385 = vrot.slane %v384, 4
    %v386 = vadd.f32 %v384, %v385
    %v387 = vrot.slane %v386, 2
    %v388 = vadd.f32 %v386, %v387
    %v389 = vrot.slane %v388, 1
    %v390 = vadd.f32 %v388, %v389
    %s391 = vtos %v390
    %s392 = scalar_lea.smem [#allocation15], 0
    %393 = sst [smem:[%s392]] %s391
    // Predicated region
    $region42: #{tpu_custom_call.1} parent=1 // pred_check
      _
    $region43: #{tpu_custom_call.1} parent=1 // pred_check_branch
      %395 = sbr.rel (0) target = $region45
    $region44: #{tpu_custom_call.1} parent=1 // pred_region
      %397 = vsyncadd [#allocation4], 0
      %s399 = sshll.u32 [#allocation12], 4
      %s400 = int_to_ptr.vmem [resolvable:$true] %s399
      %s401 = sshll.u32 %s5, 4
      %s402 = int_to_ptr.hbm [resolvable:$true] %s401
      %404 = dma.vmem_to_hbm [thread:$0]  %s400, 256, %s402, [#allocation4]
    $region45: #{tpu_custom_call.1} parent=1 // pred_fallthru
      _
    // Predicated region
    $region46: #{tpu_custom_call.1} parent=1 // pred_check
      _
    $region47: #{tpu_custom_call.1} parent=1 // pred_check_branch
      %406 = sbr.rel (0) target = $region49
    $region48: #{tpu_custom_call.1} parent=1 // pred_region
      %408 = vsyncadd [#allocation14], 0
      %s410 = sshll.u32 [#allocation13], 4
      %s411 = int_to_ptr.vmem [resolvable:$true] %s410
      %s412 = sshll.u32 %s6, 4
      %s413 = int_to_ptr.hbm [resolvable:$true] %s412
      %415 = dma.vmem_to_hbm [thread:$0]  %s411, 128, %s413, [#allocation14]
    $region49: #{tpu_custom_call.1} parent=1 // pred_fallthru
      _
    // Predicated region
    $region50: #{tpu_custom_call.1} parent=1 // pred_check
      _
    $region51: #{tpu_custom_call.1} parent=1 // pred_check_branch
      %417 = sbr.rel (0) target = $region53
    $region52: #{tpu_custom_call.1} parent=1 // pred_region
      %419 = vsyncadd [#allocation5], 0
      %s421 = sshll.u32 %s7, 4
      %s422 = int_to_ptr.hbm [resolvable:$true] %s421
      %424 = dma.smem_to_hbm [#allocation15], 16, %s422, [#allocation5]
    $region53: #{tpu_custom_call.1} parent=1 // pred_fallthru
      _
    // Predicated region
    $region54: #{tpu_custom_call.1} parent=1 // pred_check
      _
    $region55: #{tpu_custom_call.1} parent=1 // pred_check_branch
      %426 = sbr.rel (0) target = $region57
    $region56: #{tpu_custom_call.1} parent=1 // pred_region
      %428 = dma.done [#allocation4], 256
    $region57: #{tpu_custom_call.1} parent=1 // pred_fallthru
      _
    // Predicated region
    $region58: #{tpu_custom_call.1} parent=1 // pred_check
      _
    $region59: #{tpu_custom_call.1} parent=1 // pred_check_branch
      %430 = sbr.rel (0) target = $region61
    $region60: #{tpu_custom_call.1} parent=1 // pred_region
      %432 = dma.done [#allocation14], 128
    $region61: #{tpu_custom_call.1} parent=1 // pred_fallthru
      _
    // Predicated region
    $region62: #{tpu_custom_call.1} parent=1 // pred_check
      _
    $region63: #{tpu_custom_call.1} parent=1 // pred_check_branch
      %434 = sbr.rel (0) target = $region65
    $region64: #{tpu_custom_call.1} parent=1 // pred_region
      %436 = dma.done [#allocation5], 16
    $region65: #{tpu_custom_call.1} parent=1 // pred_fallthru
      _
    %437 = sfence
    %438 = vsyncpa [#allocation3], 1
    %439 = vsyncpa [#allocation7], 1
    %440 = vsyncpa [#allocation10], 1
    %441 = vsyncpa [#allocation4], 1
    %442 = vsyncpa [#allocation14], 1
    %443 = vsyncpa [#allocation5], 1

</llo_original>
